<compile_context>
chip_gen: v5e
topology: v5e:2x2
jax: 0.10.0
libtpu: 0.0.40
codegen_flags: <defaults>
</compile_context>

<pallas_src>
import functools

import jax
import jax.numpy as jnp
from jax import lax
from jax.experimental import pallas as pl
from jax.experimental.pallas import tpu as pltpu


def _gemm_bias_relu_kernel(a_ref, w_ref, b_ref, o_ref, *, clip6):
    # a_ref: (1, K, MT)   K-major im2col patch slab tile for one batch element
    # w_ref: (Cout, K)    BN-scale-folded weights, K ordered (kh, kw, cin)
    # b_ref: (Cout, 1)    folded BN bias
    # o_ref: (1, Cout, MT) lane-dense output tile (MT = flattened OH*OW tile)
    y = jnp.dot(w_ref[...], a_ref[0],
                preferred_element_type=jnp.float32)      # (Cout, MT) — no transpose needed
    y = y + b_ref[...]
    y = jnp.maximum(y, 0.0)
    if clip6:
        y = jnp.minimum(y, 6.0)
    o_ref[0] = y.astype(o_ref.dtype)


def _pick_m_tile(m_total, k_dim, cout, budget_bytes=8 * 1024 * 1024):
    # Largest tile of the flattened spatial dim such that:
    #   * it is a multiple of 128 lanes (unmasked, lane-dense vst) when possible,
    #   * double-buffered f32 patch + output tiles stay inside a conservative per-step
    #     VMEM budget (safe even under v5e's 16 MiB default scoped limit),
    #   * capped at 2048 lanes (measured HBM-roofline sweet spot is ~512-2048).
    cap = budget_bytes // (2 * 4 * (k_dim + cout))       # two double-buffered f32 tiles
    cap = max(128, min(2048, cap))
    if m_total <= cap:
        return m_total                                   # whole image per step
    for t in range(cap - cap % 128, 127, -128):
        if m_total % t == 0:
            return t
    return m_total                                       # fallback: full dim is always legal


def conv_bn_relu_pallas(x_nchw, weight_oihw, gamma, beta, running_mean, running_var,
                        *, stride, padding, eps=1e-5, relu='relu6'):
    """Conv2d(bias=False) + BatchNorm2d (eval-mode, folded) + ReLU6/ReLU.

    x_nchw:      (N, Cin, H, W)
    weight_oihw: (Cout, Cin, KH, KW)   (PyTorch layout)
    returns:     (N, Cout, OH, OW)
    """
    n, cin, h, w = x_nchw.shape
    cout, _, kh_sz, kw_sz = weight_oihw.shape
    oh = (h + 2 * padding - kh_sz) // stride + 1
    ow = (w + 2 * padding - kw_sz) // stride + 1
    k_dim = kh_sz * kw_sz * cin
    m_total = oh * ow

    # ---- Wrapper-side layout glue (same class as the old transpose/pad/reshape) ----
    # im2col: build the K-major patch slab so the kernel is a pure GEMM + epilogue.
    # TODO(synk): for large images this materializes a KH*KW-inflated activation in HBM;
    #             an in-kernel 128-aligned halo gather would avoid that at production sizes.
    x_pad = jnp.pad(x_nchw.astype(jnp.float32),
                    ((0, 0), (0, 0), (padding, padding), (padding, padding)))
    taps = []
    for kh in range(kh_sz):
        for kw in range(kw_sz):
            taps.append(lax.slice(
                x_pad,
                (0, 0, kh, kw),
                (n, cin, kh + (oh - 1) * stride + 1, kw + (ow - 1) * stride + 1),
                (1, 1, stride, stride)))                 # (N, Cin, OH, OW) per tap
    patches = jnp.stack(taps, axis=1)                    # (N, KH*KW, Cin, OH, OW)
    a = patches.reshape(n, k_dim, m_total)               # (N, K, M); K order = (kh, kw, cin)

    # Fold eval-mode BatchNorm: scale into the weights, bias as a per-channel epilogue add.
    # TODO(synk): training-mode BN (batch statistics) is not reproduced here.
    scale = gamma / jnp.sqrt(running_var + eps)                               # (Cout,)
    bias = (beta - running_mean * scale).reshape(cout, 1).astype(jnp.float32)
    w_mat = (jnp.transpose(weight_oihw, (0, 2, 3, 1)).reshape(cout, k_dim)
             * scale[:, None]).astype(jnp.float32)                           # (Cout, K)

    m_tile = _pick_m_tile(m_total, k_dim, cout)
    m_tiles = m_total // m_tile

    kernel = functools.partial(_gemm_bias_relu_kernel, clip6=(relu == 'relu6'))

    cost = pl.CostEstimate(
        flops=2 * n * m_total * k_dim * cout,
        transcendentals=0,
        bytes_accessed=4 * (n * k_dim * m_total + k_dim * cout + cout + n * cout * m_total))

    out = pl.pallas_call(
        kernel,
        out_shape=jax.ShapeDtypeStruct((n, cout, m_total), x_nchw.dtype),
        grid_spec=pltpu.PrefetchScalarGridSpec(
            num_scalar_prefetch=0,
            grid=(n, m_tiles),                            # >= 2 parallel steps (v7x megacore)
            in_specs=[
                pl.BlockSpec((1, k_dim, m_tile), lambda i, t: (i, 0, t)),
                pl.BlockSpec((cout, k_dim), lambda i, t: (0, 0)),
                pl.BlockSpec((cout, 1), lambda i, t: (0, 0)),
            ],
            out_specs=pl.BlockSpec((1, cout, m_tile), lambda i, t: (i, 0, t)),
        ),
        compiler_params=pltpu.CompilerParams(
            dimension_semantics=("parallel", "parallel"),
            vmem_limit_bytes=32 * 1024 * 1024),
        cost_estimate=cost,
    )(a, w_mat, bias)

    return out.reshape(n, cout, oh, ow)                   # metadata-only reshape back to NCHW


def _reference(x_nchw, weight_oihw, gamma, beta, mean, var, *, stride, padding,
               eps=1e-5, relu='relu6'):
    y = lax.conv_general_dilated(
        x_nchw.astype(jnp.float32), weight_oihw.astype(jnp.float32),
        window_strides=(stride, stride),
        padding=[(padding, padding), (padding, padding)],
        dimension_numbers=('NCHW', 'OIHW', 'NCHW'))
    s = (gamma / jnp.sqrt(var + eps))[None, :, None, None]
    b = (beta - mean * gamma / jnp.sqrt(var + eps))[None, :, None, None]
    y = y * s + b
    y = jnp.maximum(y, 0.0)
    if relu == 'relu6':
        y = jnp.minimum(y, 6.0)
    return y


if __name__ == "__main__":
    # Module config: conv_bn_relu(inp=4, oup=8, kernel=3, stride, padding=1, relu)
    inp, oup, ksz = 4, 8, 3
    N, H, W = 2, 16, 16

    key = jax.random.PRNGKey(0)
    k_x, k_w, k_g, k_b, k_m, k_v = jax.random.split(key, 6)

    x = jax.random.normal(k_x, (N, inp, H, W), dtype=jnp.float32)
    weight = jax.random.normal(k_w, (oup, inp, ksz, ksz), dtype=jnp.float32) * 0.1
    gamma = 1.0 + 0.1 * jax.random.normal(k_g, (oup,), dtype=jnp.float32)
    beta = 0.1 * jax.random.normal(k_b, (oup,), dtype=jnp.float32)
    running_mean = 0.1 * jax.random.normal(k_m, (oup,), dtype=jnp.float32)
    running_var = jnp.abs(1.0 + 0.1 * jax.random.normal(k_v, (oup,), dtype=jnp.float32))

    # Case 1: the canonical module config (stride=1, padding=1, ReLU6).
    out = conv_bn_relu_pallas(x, weight, gamma, beta, running_mean, running_var,
                              stride=1, padding=1, relu='relu6')
    out = jax.block_until_ready(out)
    ref = _reference(x, weight, gamma, beta, running_mean, running_var,
                     stride=1, padding=1, relu='relu6')
    assert out.shape == (N, oup, H, W)
    assert jnp.allclose(out, ref, atol=1e-4, rtol=1e-4)

    # Case 2: previously-untested paths — stride=2 and plain ReLU.
    out2 = conv_bn_relu_pallas(x, weight, gamma, beta, running_mean, running_var,
                               stride=2, padding=1, relu='relu')
    out2 = jax.block_until_ready(out2)
    ref2 = _reference(x, weight, gamma, beta, running_mean, running_var,
                      stride=2, padding=1, relu='relu')
    assert out2.shape == ref2.shape
    assert jnp.allclose(out2, ref2, atol=1e-4, rtol=1e-4)

    print("KERNEL_OK")
</pallas_src>

<mosaic_0001>
module attributes {stable_mosaic.version = 11 : i64} {
  func.func @_gemm_bias_relu_kernel(%arg0: i32, %arg1: i32, %arg2: memref<1x36x256xf32, #tpu.memory_space<vmem>>, %arg3: memref<8x36xf32, #tpu.memory_space<vmem>>, %arg4: memref<8x1xf32, #tpu.memory_space<vmem>>, %arg5: memref<1x8x256xf32, #tpu.memory_space<vmem>>) attributes {dimension_semantics = [#tpu.dimension_semantics<parallel>, #tpu.dimension_semantics<parallel>], iteration_bounds = array<i64: 2, 1>, scalar_prefetch = 0 : i64, scratch_operands = 0 : i64, tpu.core_type = #tpu.core_type<tc>, window_params = [{transform_indices = @transform_0, window_bounds = array<i64: 1, 36, 256>}, {pipeline_mode = #tpu.pipeline_mode<synchronous>, transform_indices = @transform_1, window_bounds = array<i64: 8, 36>}, {pipeline_mode = #tpu.pipeline_mode<synchronous>, transform_indices = @transform_2, window_bounds = array<i64: 8, 1>}, {transform_indices = @transform_3, window_bounds = array<i64: 1, 8, 256>}]} {
    %c0 = arith.constant 0 : index
    %c0_0 = arith.constant 0 : index
    %0 = vector.load %arg3[%c0, %c0_0] : memref<8x36xf32, #tpu.memory_space<vmem>>, vector<8x36xf32>
    %c0_1 = arith.constant 0 : index
    %c0_2 = arith.constant 0 : index
    %c0_3 = arith.constant 0 : index
    %1 = vector.load %arg2[%c0_1, %c0_2, %c0_3] : memref<1x36x256xf32, #tpu.memory_space<vmem>>, vector<1x36x256xf32>
    %2 = vector.shape_cast %1 : vector<1x36x256xf32> to vector<36x256xf32>
    %cst = arith.constant dense<0.000000e+00> : vector<8x256xf32>
    %3 = tpu.matmul %0, %2, %cst {dimension_numbers = #tpu.dot_dimension_numbers<[1], [0], [0], [1], [0, 0, 1, 1], [], []>} : vector<8x36xf32>, vector<36x256xf32>, vector<8x256xf32> -> vector<8x256xf32>
    %c0_4 = arith.constant 0 : index
    %c0_5 = arith.constant 0 : index
    %4 = vector.load %arg4[%c0_4, %c0_5] : memref<8x1xf32, #tpu.memory_space<vmem>>, vector<8x1xf32>
    %5 = vector.broadcast %4 : vector<8x1xf32> to vector<8x256xf32>
    %6 = arith.addf %3, %5 : vector<8x256xf32>
    %cst_6 = arith.constant 0.000000e+00 : f32
    %7 = vector.broadcast %cst_6 : f32 to vector<8x256xf32>
    %8 = arith.maximumf %6, %7 : vector<8x256xf32>
    %cst_7 = arith.constant 6.000000e+00 : f32
    %9 = vector.broadcast %cst_7 : f32 to vector<8x256xf32>
    %10 = arith.minimumf %8, %9 : vector<8x256xf32>
    %c0_8 = arith.constant 0 : index
    %c0_9 = arith.constant 0 : index
    %c0_10 = arith.constant 0 : index
    %11 = vector.load %arg5[%c0_8, %c0_9, %c0_10] : memref<1x8x256xf32, #tpu.memory_space<vmem>>, vector<1x8x256xf32>
    %12 = vector.shape_cast %11 : vector<1x8x256xf32> to vector<8x256xf32>
    %13 = vector.shape_cast %10 : vector<8x256xf32> to vector<1x8x256xf32>
    tpu.vector_store %arg5[%c0_8, %c0_9, %c0_10], %13 {strides = array<i32>} : memref<1x8x256xf32, #tpu.memory_space<vmem>>, vector<1x8x256xf32>,
    return
  }
  func.func @transform_0(%arg0: i32, %arg1: i32) -> (i32, i32, i32) {
    %c0_i32 = arith.constant 0 : i32
    %c0_i32_0 = arith.constant 0 : i32
    return %arg0, %c0_i32, %arg1 : i32, i32, i32
  }
  func.func @transform_1(%arg0: i32, %arg1: i32) -> (i32, i32) {
    %c0_i32 = arith.constant 0 : i32
    %c0_i32_0 = arith.constant 0 : i32
    %c0_i32_1 = arith.constant 0 : i32
    return %c0_i32, %c0_i32_0 : i32, i32
  }
  func.func @transform_2(%arg0: i32, %arg1: i32) -> (i32, i32) {
    %c0_i32 = arith.constant 0 : i32
    %c0_i32_0 = arith.constant 0 : i32
    %c0_i32_1 = arith.constant 0 : i32
    return %c0_i32, %c0_i32_0 : i32, i32
  }
  func.func @transform_3(%arg0: i32, %arg1: i32) -> (i32, i32, i32) {
    %c0_i32 = arith.constant 0 : i32
    %c0_i32_0 = arith.constant 0 : i32
    return %arg0, %c0_i32, %arg1 : i32, i32, i32
  }
}

</mosaic_0001>

<llo_original>
// kernel: tpu_custom_call.1
$region0: #{tpu_custom_call.1}
  #allocation0 [shape = 'u32[]', space=smem, size = 0x4, offset = 0x4, fixed_abs, tag = 'smem constant byte address 0x4 - core index']
  #allocation1 [shape = 'u32[72,128]{1,0:T(1,128)}', space=vmem, size = 0x9000, scoped, tag = 'internal scratch']
  %s0 = inlined_call_operand.vmem [shape: f32[2,36,256], index: 0, kind: input, shape index: {}]
  %s1 = inlined_call_operand.vmem [shape: f32[8,36], index: 1, kind: input, shape index: {}]
  %s2 = inlined_call_operand.vmem [shape: f32[8,1], index: 2, kind: input, shape index: {}]
  %s3 = inlined_call_operand.hbm [shape: f32[2,8,256], index: 3, kind: output, shape index: {}]
  %s4 = sld [smem:[#allocation0]]
  $region45: #{tpu_custom_call.1} parent=0
    _
  %s6 = ssub.s32 1, %s4
  %s7 = scalar_select 0, %s6, %s4
  $region1: #{tpu_custom_call.1} parent=0
    #allocation2 [shape = 'u8[16384]{0}', space=vmem, size = 0x4000, scoped, tag = 'output window, operand 0']
    #allocation3 [shape = 's32[2]{0}', space=sflag, size = 0x8, scoped, tag = 'scoped memory for tpu_custom_call.1']
    %8 = vsyncpa [#allocation3], 0
    %s9 = scalar_lea.sflag [#allocation3], 1
    %10 = vsyncpa %s9, 0
    loop: start=0, step=1, limit=4
    $region2: #{tpu_custom_call.1} parent=1 // loop_pre_header
      _
    $region3: #{tpu_custom_call.1} parent=1 // loop_header
      %s12 = sphi 0, %s16
      %p13 = scmp.ge.s32.totalorder %s12, 4
      %s19 = sphi 0, %s31
      %s20 = sphi 0, %s27
      %s21 = sphi 0, %s19
      %s22 = sphi 0, %s20
      %s23 = sphi 0, %s21
      %s24 = sphi 0, %s22
      %s36 = sphi 0, %s38
      %s39 = sphi 0, %s36
      %s40 = sphi 0, %s39
      %s56 = sphi 0, %s40
      %s60 = sphi 0, %s60
      %s62 = sphi 0, %s60
      %s63 = sphi 0, %s62
      %s77 = sphi 0, %s63
      %s81 = sphi 0, %s81
      %s83 = sphi 0, %s81
      %s84 = sphi 0, %s83
      %s98 = sphi 0, %s84
      %s106 = sphi 0, %s108
      %s109 = sphi 0, %s106
      %s110 = sphi 0, %s109
      %s126 = sphi 0, %s110
    $region4: #{tpu_custom_call.1} parent=1 // loop_header_branch
      %15 = sbr.rel (%p13) target = $region8
    $region5: #{tpu_custom_call.1} parent=1 // loop_body
      %s17 = ssub.s32 %s12, 1
      %s18 = ssub.s32 %s12, 2
      %s25 = sadd.s32 1, %s20
      %p26 = scmp.ge.s32.totalorder %s25, 1
      %s27 = scalar_select %p26, 0, %s25
      %s28 = sadd.s32 1, %s19
      %s29 = scalar_select %p26, %s28, %s19
      %p30 = scmp.ge.s32.totalorder %s29, 2
      %s31 = scalar_select %p30, 0, %s29
      %s32 = ssub.s32 %s19, %s31
      %s33 = ssub.s32 %s20, %s27
      %s34 = sor.u32 %s32, %s33
      %p35 = scmp.eq.s32.totalorder %s34, 0
      %s37 = sadd.s32 %s36, 1
      %s38 = scalar_select %p35, %s36, %s37
      %p41 = pneg %p35
      %p42 = scmp.eq.s32.totalorder %s12, 1
      %p43 = por %p41, %p42
      %p44 = scmp.ne.s32.totalorder %s36, %s39
      %p45 = scmp.eq.s32.totalorder %s12, 0
      %p46 = por %p44, %p45
      %p47 = scmp.ne.s32.totalorder %s36, %s39
      %p48 = scmp.eq.s32.totalorder %s17, 1
      %p49 = por %p47, %p48
      %p50 = scmp.ne.s32.totalorder %s39, %s40
      %p51 = scmp.eq.s32.totalorder %s17, 0
      %p52 = por %p50, %p51
      %p53 = scmp.ne.s32.totalorder %s39, %s40
      %p54 = scmp.eq.s32.totalorder %s18, 1
      %p55 = por %p53, %p54
      %p57 = scmp.ne.s32.totalorder %s40, %s56
      %p58 = scmp.eq.s32.totalorder %s18, 0
      %p59 = por %p57, %p58
      %s61 = sadd.s32 %s60, 1
      %p64 = scmp.eq.s32.totalorder %s12, 1
      %p65 = scmp.ne.s32.totalorder %s60, %s62
      %p66 = scmp.eq.s32.totalorder %s12, 0
      %p67 = por %p65, %p66
      %p68 = scmp.ne.s32.totalorder %s60, %s62
      %p69 = scmp.eq.s32.totalorder %s17, 1
      %p70 = por %p68, %p69
      %p71 = scmp.ne.s32.totalorder %s62, %s63
      %p72 = scmp.eq.s32.totalorder %s17, 0
      %p73 = por %p71, %p72
      %p74 = scmp.ne.s32.totalorder %s62, %s63
      %p75 = scmp.eq.s32.totalorder %s18, 1
      %p76 = por %p74, %p75
      %p78 = scmp.ne.s32.totalorder %s63, %s77
      %p79 = scmp.eq.s32.totalorder %s18, 0
      %p80 = por %p78, %p79
      %s82 = sadd.s32 %s81, 1
      %p85 = scmp.eq.s32.totalorder %s12, 1
      %p86 = scmp.ne.s32.totalorder %s81, %s83
      %p87 = scmp.eq.s32.totalorder %s12, 0
      %p88 = por %p86, %p87
      %p89 = scmp.ne.s32.totalorder %s81, %s83
      %p90 = scmp.eq.s32.totalorder %s17, 1
      %p91 = por %p89, %p90
      %p92 = scmp.ne.s32.totalorder %s83, %s84
      %p93 = scmp.eq.s32.totalorder %s17, 0
      %p94 = por %p92, %p93
      %p95 = scmp.ne.s32.totalorder %s83, %s84
      %p96 = scmp.eq.s32.totalorder %s18, 1
      %p97 = por %p95, %p96
      %p99 = scmp.ne.s32.totalorder %s84, %s98
      %p100 = scmp.eq.s32.totalorder %s18, 0
      %p101 = por %p99, %p100
      %s102 = ssub.s32 %s19, %s31
      %s103 = ssub.s32 %s20, %s27
      %s104 = sor.u32 %s102, %s103
      %p105 = scmp.eq.s32.totalorder %s104, 0
      %s107 = sadd.s32 %s106, 1
      %s108 = scalar_select %p105, %s106, %s107
      %p111 = pneg %p105
      %p112 = scmp.eq.s32.totalorder %s12, 1
      %p113 = por %p111, %p112
      %p114 = scmp.ne.s32.totalorder %s106, %s109
      %p115 = scmp.eq.s32.totalorder %s12, 0
      %p116 = por %p114, %p115
      %p117 = scmp.ne.s32.totalorder %s106, %s109
      %p118 = scmp.eq.s32.totalorder %s17, 1
      %p119 = por %p117, %p118
      %p120 = scmp.ne.s32.totalorder %s109, %s110
      %p121 = scmp.eq.s32.totalorder %s17, 0
      %p122 = por %p120, %p121
      %p123 = scmp.ne.s32.totalorder %s109, %s110
      %p124 = scmp.eq.s32.totalorder %s18, 1
      %p125 = por %p123, %p124
      %p127 = scmp.ne.s32.totalorder %s110, %s126
      %p128 = scmp.eq.s32.totalorder %s18, 0
      %p129 = por %p127, %p128
      %p130 = scmp.le.s32.totalorder 1, %s12
      %p131 = scmp.lt.s32.totalorder %s12, 3
      %p132 = pnand %p130, %p131
      %p133 = pneg %p132
      // Predicated region
      $region9: #{tpu_custom_call.1} parent=5 // pred_check
        _
      $region10: #{tpu_custom_call.1} parent=5 // pred_check_branch
        %135 = sbr.rel (%p132) target = $region12
      $region11: #{tpu_custom_call.1} parent=5 // pred_region
        %s136 = ssub.s32 %s12, 1
        // Predicated region
        $region13: #{tpu_custom_call.1} parent=11 // pred_check
          %p137 = pneg %p73
        $region14: #{tpu_custom_call.1} parent=11 // pred_check_branch
          %139 = sbr.rel (%p137) target = $region16
        $region15: #{tpu_custom_call.1} parent=11 // pred_region
          _
        $region16: #{tpu_custom_call.1} parent=11 // pred_fallthru
          _
        // Predicated region
        $region17: #{tpu_custom_call.1} parent=11 // pred_check
          %p140 = pneg %p94
        $region18: #{tpu_custom_call.1} parent=11 // pred_check_branch
          %142 = sbr.rel (%p140) target = $region20
        $region19: #{tpu_custom_call.1} parent=11 // pred_region
          _
        $region20: #{tpu_custom_call.1} parent=11 // pred_fallthru
          _
      $region12: #{tpu_custom_call.1} parent=5 // pred_fallthru
        _
      %p143 = scmp.lt.s32.totalorder %s12, 2
      // Predicated region
      $region21: #{tpu_custom_call.1} parent=5 // pred_check
        %p144 = pneg %p143
      $region22: #{tpu_custom_call.1} parent=5 // pred_check_branch
        %146 = sbr.rel (%p144) target = $region24
      $region23: #{tpu_custom_call.1} parent=5 // pred_region
        // Predicated region
        $region25: #{tpu_custom_call.1} parent=23 // pred_check
          %p147 = pneg %p46
        $region26: #{tpu_custom_call.1} parent=23 // pred_check_branch
          %149 = sbr.rel (%p147) target = $region28
        $region27: #{tpu_custom_call.1} parent=23 // pred_region
          %s150 = smul.u32 2, %s20
          %p151 = scmp.lt.s32.totalorder %s19, 1
          %s152 = scalar_select %p151, %s19, 1
          %p153 = scmp.lt.s32.totalorder %s150, 1
          %s154 = scalar_select %p153, %s150, 1
          %s155 = smul.addr %s152, 10
          %s156 = sadd.s32 %s154, %s155
          %s157 = smul.addr %s156, 8
          %s158 = scalar_lea.vmem %s0, %s157
          %s159 = smul.u32 2, %s20
        $region28: #{tpu_custom_call.1} parent=23 // pred_fallthru
          _
      $region24: #{tpu_custom_call.1} parent=5 // pred_fallthru
        _
      %p160 = scmp.le.s32.totalorder 1, %s12
      %p161 = scmp.lt.s32.totalorder %s12, 3
      %p162 = pnand %p160, %p161
      %p163 = pneg %p162
      // Predicated region
      $region29: #{tpu_custom_call.1} parent=5 // pred_check
        _
      $region30: #{tpu_custom_call.1} parent=5 // pred_check_branch
        %165 = sbr.rel (%p162) target = $region32
      $region31: #{tpu_custom_call.1} parent=5 // pred_region
        %s166 = ssub.s32 %s12, 1
        %s167 = smul.u32 2, %s22
        %p168 = scmp.lt.s32.totalorder %s21, 1
        %s169 = scalar_select %p168, %s21, 1
        %p170 = scmp.lt.s32.totalorder %s167, 1
        %s171 = scalar_select %p170, %s167, 1
        %s172 = smul.addr %s169, 10
        %s173 = sadd.s32 %s171, %s172
        %s174 = smul.addr %s173, 8
        %s175 = scalar_lea.vmem %s0, %s174
        %p176 = pneg %p52
        %p177 = pneg %p49
        %p178 = pneg %p73
        %p179 = pneg %p70
        %p180 = pneg %p94
        %p181 = pneg %p91
        %p182 = pneg %p122
        %p183 = pneg %p119
        %s184 = sand.u32 %s109, 1
        %s185 = scalar_lea.sflag [#allocation3], %s184
        %s186 = sand.u32 %s109, 1
        %s187 = smul.addr %s186, 16
        %s188 = scalar_lea.vmem [#allocation2], %s187
        %s189 = smul.u32 2, %s22
        %p190 = scmp.lt.s32.totalorder %s21, 1
        %s191 = scalar_select %p190, %s21, 1
        %p192 = scmp.lt.s32.totalorder %s189, 1
        %s193 = scalar_select %p192, %s189, 1
        %s194 = smul.addr %s191, 10
        %s195 = sadd.s32 %s193, %s194
        %s196 = smul.addr %s195, 8
        %s197 = scalar_lea.vmem %s0, %s196
        %s198 = smul.u32 2, %s22
        %s199 = smul.u32 2, %s22
        %v200 = vld [vmem:[%s1] sm:$0xff]
        %v201 = vld [vmem:[%s197] sm:$0xff]
        %v202 = vld [vmem:[%s197 + $0x8] sm:$0xff]
        %v203 = vld [vmem:[%s197 + $0x10] sm:$0xff]
        %v204 = vld [vmem:[%s197 + $0x18] sm:$0xff]
        %v205 = vld [vmem:[%s197 + $0x20] sm:$0xff]
        %v206 = vld [vmem:[%s197 + $0x28] sm:$0xff]
        %v207 = vld [vmem:[%s197 + $0x30] sm:$0xff]
        %v208 = vld [vmem:[%s197 + $0x38] sm:$0xff]
        %v209 = vld [vmem:[%s197 + $0x40] sm:$0xf]
        %v210 = vld [vmem:[%s197 + $0x48] sm:$0xf]
        %v211 = vld [vmem:[%s2] sm:$0xff]
        %213 = vset.pattern.permute.xlu0 0
        %214 = vperm.xlu0 %213, %v211
        %v215 = vpop.permute.xlu0 %214
        %vm217 = vcmask 293888
        %v219 = vsel %vm217, %v200, 0
        %vm221 = vcmask 1043456
        %v223 = vsel %vm221, %v209, 0
        %v226 = vsel %vm221, %v210, 0
        %228 = vmatpush.msra.mxu0 0.0
        %229 = vmatpush.msra.mxu0 0.0
        %230 = vmatpush.msra.mxu0 0.0
        %231 = vmatpush.msra.mxu0 0.0
        %232 = vmatpush.msra.mxu0 0.0
        %233 = vmatpush.msra.mxu0 0.0
        %234 = vmatpush.msra.mxu0 0.0
        %235 = vmatpush.msra.mxu0 0.0
        %236 = vmatpush.msra.mxu0 0.0
        %237 = vmatpush.msra.mxu0 0.0
        %238 = vmatpush.msra.mxu0 0.0
        %239 = vmatpush.msra.mxu0 %v223
        %240 = vmatpush.msra.mxu0 %v207
        %241 = vmatpush.msra.mxu0 %v205
        %242 = vmatpush.msra.mxu0 %v203
        %243 = vmatpush.msra.mxu0 %v201
        %244 = vmatmul.f32.gmra.mxu0 %v219
        %v245 = vpop.f32.mrf.mxu0
        %v246 = vadd.f32 %v215, %v245
        %247 = vdwg.mxu0
        %248 = vmatpush.msra.mxu0 0.0
        %249 = vmatpush.msra.mxu0 0.0
        %250 = vmatpush.msra.mxu0 0.0
        %251 = vmatpush.msra.mxu0 0.0
        %252 = vmatpush.msra.mxu0 0.0
        %253 = vmatpush.msra.mxu0 0.0
        %254 = vmatpush.msra.mxu0 0.0
        %255 = vmatpush.msra.mxu0 0.0
        %256 = vmatpush.msra.mxu0 0.0
        %257 = vmatpush.msra.mxu0 0.0
        %258 = vmatpush.msra.mxu0 0.0
        %259 = vmatpush.msra.mxu0 %v226
        %260 = vmatpush.msra.mxu0 %v208
        %261 = vmatpush.msra.mxu0 %v206
        %262 = vmatpush.msra.mxu0 %v204
        %263 = vmatpush.msra.mxu0 %v202
        %264 = vmatmul.f32.gmra.mxu0 %v219
        %v265 = vpop.f32.mrf.mxu0
        %v266 = vadd.f32 %v215, %v265
        %267 = vdwg.mxu0
        %v268 = vmax.f32 %v246, 0.0
        %v269 = vmax.f32 %v266, 0.0
        %v270 = vmin.f32 %v268, 6.0
        %v271 = vmin.f32 %v269, 6.0
        %272 = vst [vmem:[%s188] sm:$0xff] %v270
        %273 = vst [vmem:[%s188 + $0x8] sm:$0xff] %v271
        %s274 = sand.u32 %s109, 1
        %s275 = scalar_lea.sflag [#allocation3], %s274
        %s276 = sand.u32 %s109, 1
        %s277 = smul.addr %s276, 16
        %s278 = scalar_lea.vmem [#allocation2], %s277
        // Predicated region
        $region33: #{tpu_custom_call.1} parent=31 // pred_check
          %p279 = pneg %p119
        $region34: #{tpu_custom_call.1} parent=31 // pred_check_branch
          %281 = sbr.rel (%p279) target = $region36
        $region35: #{tpu_custom_call.1} parent=31 // pred_region
          %s282 = smul.u32 2, %s22
          %284 = vsyncadd %s275, 0
          %s285 = smul.addr %s21, 2
          %s286 = sadd.s32 %s282, %s285
          %s287 = smul.addr %s286, 8
          %s288 = scalar_lea.hbm %s3, %s287
          %s290 = sshll.u32 %s278, 4
          %s291 = int_to_ptr.vmem [resolvable:$true] %s290
          %s292 = sshll.u32 %s288, 4
          %s293 = int_to_ptr.hbm [resolvable:$true] %s292
          %295 = dma.vmem_to_hbm [thread:$0]  %s291, 256, %s293, %s275
        $region36: #{tpu_custom_call.1} parent=31 // pred_fallthru
          _
      $region32: #{tpu_custom_call.1} parent=5 // pred_fallthru
        _
      %p296 = scmp.le.s32.totalorder 2, %s12
      // Predicated region
      $region37: #{tpu_custom_call.1} parent=5 // pred_check
        %p297 = pneg %p296
      $region38: #{tpu_custom_call.1} parent=5 // pred_check_branch
        %299 = sbr.rel (%p297) target = $region40
      $region39: #{tpu_custom_call.1} parent=5 // pred_region
        %s300 = ssub.s32 %s12, 2
        // Predicated region
        $region41: #{tpu_custom_call.1} parent=39 // pred_check
          %p301 = pneg %p125
        $region42: #{tpu_custom_call.1} parent=39 // pred_check_branch
          %303 = sbr.rel (%p301) target = $region44
        $region43: #{tpu_custom_call.1} parent=39 // pred_region
          %s304 = sand.u32 %s110, 1
          %s305 = scalar_lea.sflag [#allocation3], %s304
          %s306 = sand.u32 %s110, 1
          %s307 = smul.addr %s306, 16
          %s308 = scalar_lea.vmem [#allocation2], %s307
          %310 = dma.done %s305, 256
        $region44: #{tpu_custom_call.1} parent=39 // pred_fallthru
          _
      $region40: #{tpu_custom_call.1} parent=5 // pred_fallthru
        _
    $region6: #{tpu_custom_call.1} parent=1 // loop_footer
      %s16 = sadd.s32 1, %s12
    $region7: #{tpu_custom_call.1} parent=1 // loop_footer_branch
      %11 = sbr.rel target = $region3
    $region8: #{tpu_custom_call.1} parent=1 // loop_exit
      _
    %311 = vsyncpa [#allocation3], 1
    %s312 = scalar_lea.sflag [#allocation3], 1
    %313 = vsyncpa %s312, 1

</llo_original>
